<compile_context>
chip_gen: v6e
topology: v6e:2x2x1
jax: 0.10.0
libtpu: 0.0.40
codegen_flags: <defaults>
</compile_context>

<pallas_src>
import jax
import jax.numpy as jnp
from jax.experimental import pallas as pl
from jax.experimental.pallas import tpu as pltpu


def time_embedding_kernel(x_ref, w1_ref, s1_ref, b1_ref,
                          w2_ref, s2_ref, b2_ref, o_ref):
    # linear_1: (B, n_embd) @ (n_embd, hidden) on the MXU, f32 accumulate.
    x = x_ref[...].astype(jnp.bfloat16)
    w1 = w1_ref[...].astype(jnp.bfloat16)          # int8 -> bf16 is exact
    h = jnp.dot(x, w1, preferred_element_type=jnp.float32)
    h = h * s1_ref[...] + b1_ref[...]              # per-column dequant + bias (f32)

    # SiLU = x * sigmoid(x); sigmoid on the EUP, mul on the VPU, all f32.
    h = h * jax.nn.sigmoid(h)

    # linear_2 (this core's column block): (B, hidden) @ (hidden, hidden/S).
    w2 = w2_ref[...].astype(jnp.bfloat16)
    out = jnp.dot(h.astype(jnp.bfloat16), w2, preferred_element_type=jnp.float32)
    out = out * s2_ref[...] + b2_ref[...]
    o_ref[...] = out.astype(o_ref.dtype)


def _quantize_per_column_int8(w):
    """Symmetric per-output-channel int8 quantization of an (in, out) weight."""
    amax = jnp.max(jnp.abs(w), axis=0, keepdims=True)                # (1, out)
    scale = jnp.where(amax > 0.0, amax / 127.0, 1.0).astype(jnp.float32)
    q = jnp.clip(jnp.round(w / scale), -127.0, 127.0).astype(jnp.int8)
    return q, scale


def convert_torch_params(w1_pt, b1_pt, w2_pt, b2_pt):
    """One-time (init-time) conversion of PyTorch nn.Linear params.

    w*_pt are (out_features, in_features).  Returns (in, out) int8 weights with
    per-output-channel (1, out) f32 scales and (1, out) f32 biases, so the
    per-step call path does no transposes / reshapes / quantization.
    """
    w1 = jnp.asarray(w1_pt, jnp.float32).T        # (n_embd, hidden)
    w2 = jnp.asarray(w2_pt, jnp.float32).T        # (hidden, hidden)
    w1_q, s1 = _quantize_per_column_int8(w1)
    w2_q, s2 = _quantize_per_column_int8(w2)
    b1 = jnp.asarray(b1_pt, jnp.float32).reshape(1, -1)
    b2 = jnp.asarray(b2_pt, jnp.float32).reshape(1, -1)
    return w1_q, s1, b1, w2_q, s2, b2


def _default_column_splits(hidden: int) -> int:
    """2-way column split of linear_2 on v7x (2 TCs/chip); 1 elsewhere."""
    try:
        kind = jax.devices()[0].device_kind.lower()
    except Exception:
        return 1
    if "v7" in kind and hidden % (2 * 128) == 0:
        return 2
    return 1


def time_embedding(x, w1_q, s1, b1, w2_q, s2, b2, *, column_splits=None):
    """x: (B, n_embd) f32 (pass ALL scheduler timesteps at once when possible);
    w1_q: (n_embd, hidden) int8; s1, b1: (1, hidden) f32;
    w2_q: (hidden, hidden) int8; s2, b2: (1, hidden) f32."""
    B, n_embd = x.shape
    hidden = w1_q.shape[1]
    assert w1_q.shape == (n_embd, hidden)
    assert w2_q.shape == (hidden, hidden)
    for p in (s1, b1, s2, b2):
        assert p.shape == (1, hidden)

    if column_splits is None:
        column_splits = _default_column_splits(hidden)
    # Respect the (8, 128) block constraint: only split when the column block
    # stays a multiple of 128 lanes.
    if hidden % column_splits or (column_splits > 1
                                  and (hidden // column_splits) % 128):
        column_splits = 1
    hc = hidden // column_splits

    # Pad the batch to a multiple of 8 (f32 sublanes -> unmasked stores).
    Bp = ((B + 7) // 8) * 8
    if Bp != B:
        x = jnp.pad(x, ((0, Bp - B), (0, 0)))

    rep = lambda shape: pl.BlockSpec(shape, lambda j: (0, 0))   # replicated
    col = lambda shape: pl.BlockSpec(shape, lambda j: (0, j))   # column block

    weight_bytes = w1_q.size + w2_q.size                        # int8
    scalar_bytes = 4 * (s1.size + b1.size + s2.size + b2.size)
    act_bytes = 4 * (x.size + Bp * hidden)
    cost = pl.CostEstimate(
        flops=2 * Bp * (n_embd * hidden + hidden * hidden),
        transcendentals=Bp * hidden,
        bytes_accessed=weight_bytes + scalar_bytes + act_bytes,
    )

    out = pl.pallas_call(
        time_embedding_kernel,
        out_shape=jax.ShapeDtypeStruct((Bp, hidden), x.dtype),
        grid=(column_splits,),
        in_specs=[
            rep((Bp, n_embd)),       # x   (replicated)
            rep((n_embd, hidden)),   # w1  (replicated: full h needed everywhere)
            rep((1, hidden)),        # s1
            rep((1, hidden)),        # b1
            col((hidden, hc)),       # w2  (dominant fetch, column-split)
            col((1, hc)),            # s2
            col((1, hc)),            # b2
        ],
        out_specs=col((Bp, hc)),
        compiler_params=pltpu.CompilerParams(
            dimension_semantics=("parallel",)),
        cost_estimate=cost,
    )(x, w1_q, s1, b1, w2_q, s2, b2)
    return out[:B]


def _reference(x, w1_q, s1, b1, w2_q, s2, b2):
    """Pure-JAX reference mirroring the kernel's int8 / bf16 / f32-acc math."""
    xb = x.astype(jnp.bfloat16).astype(jnp.float32)
    h = xb @ w1_q.astype(jnp.float32)
    h = h * s1 + b1
    h = h * jax.nn.sigmoid(h)
    hb = h.astype(jnp.bfloat16).astype(jnp.float32)
    out = hb @ w2_q.astype(jnp.float32)
    return out * s2 + b2


if __name__ == "__main__":
    n_embd = 32
    hidden = 4 * n_embd
    batch = 2

    key = jax.random.PRNGKey(0)
    kx, kw1, kb1, kw2, kb2 = jax.random.split(key, 5)

    x = jax.random.normal(kx, (batch, n_embd), dtype=jnp.float32)

    # Synthetic params in PyTorch nn.Linear layout: W1 (4n, n), W2 (4n, 4n).
    w1_pt = jax.random.normal(kw1, (hidden, n_embd), dtype=jnp.float32) * 0.02
    b1_pt = jax.random.normal(kb1, (hidden,), dtype=jnp.float32) * 0.02
    w2_pt = jax.random.normal(kw2, (hidden, hidden), dtype=jnp.float32) * 0.02
    b2_pt = jax.random.normal(kb2, (hidden,), dtype=jnp.float32) * 0.02

    # One-time init conversion (transpose, bias reshape, int8 quantization).
    params = convert_torch_params(w1_pt, b1_pt, w2_pt, b2_pt)

    out = time_embedding(x, *params)
    out = jax.block_until_ready(out)

    ref = _reference(x, *params)
    assert out.shape == (batch, hidden)
    assert out.dtype == x.dtype
    assert jnp.allclose(out, ref, atol=1e-3, rtol=1e-2), "mismatch vs reference"

    print("KERNEL_OK")
</pallas_src>

<mosaic_0001>
module attributes {stable_mosaic.version = 11 : i64} {
  func.func @time_embedding_kernel(%arg0: i32, %arg1: memref<8x32xf32, #tpu.memory_space<vmem>>, %arg2: memref<32x128xi8, #tpu.memory_space<vmem>>, %arg3: memref<1x128xf32, #tpu.memory_space<vmem>>, %arg4: memref<1x128xf32, #tpu.memory_space<vmem>>, %arg5: memref<128x128xi8, #tpu.memory_space<vmem>>, %arg6: memref<1x128xf32, #tpu.memory_space<vmem>>, %arg7: memref<1x128xf32, #tpu.memory_space<vmem>>, %arg8: memref<8x128xf32, #tpu.memory_space<vmem>>) attributes {dimension_semantics = [#tpu.dimension_semantics<parallel>], iteration_bounds = array<i64: 1>, scalar_prefetch = 0 : i64, scratch_operands = 0 : i64, tpu.core_type = #tpu.core_type<tc>, window_params = [{pipeline_mode = #tpu.pipeline_mode<synchronous>, transform_indices = @transform_0, window_bounds = array<i64: 8, 32>}, {pipeline_mode = #tpu.pipeline_mode<synchronous>, transform_indices = @transform_1, window_bounds = array<i64: 32, 128>}, {pipeline_mode = #tpu.pipeline_mode<synchronous>, transform_indices = @transform_2, window_bounds = array<i64: 1, 128>}, {pipeline_mode = #tpu.pipeline_mode<synchronous>, transform_indices = @transform_3, window_bounds = array<i64: 1, 128>}, {transform_indices = @transform_4, window_bounds = array<i64: 128, 128>}, {transform_indices = @transform_5, window_bounds = array<i64: 1, 128>}, {transform_indices = @transform_6, window_bounds = array<i64: 1, 128>}, {transform_indices = @transform_7, window_bounds = array<i64: 8, 128>}]} {
    %c0 = arith.constant 0 : index
    %c0_0 = arith.constant 0 : index
    %0 = vector.load %arg1[%c0, %c0_0] : memref<8x32xf32, #tpu.memory_space<vmem>>, vector<8x32xf32>
    %1 = arith.truncf %0 : vector<8x32xf32> to vector<8x32xbf16>
    %c0_1 = arith.constant 0 : index
    %c0_2 = arith.constant 0 : index
    %2 = vector.load %arg2[%c0_1, %c0_2] : memref<32x128xi8, #tpu.memory_space<vmem>>, vector<32x128xi8>
    %3 = arith.sitofp %2 : vector<32x128xi8> to vector<32x128xbf16>
    %cst = arith.constant dense<0.000000e+00> : vector<8x128xf32>
    %4 = tpu.matmul %1, %3, %cst {dimension_numbers = #tpu.dot_dimension_numbers<[1], [0], [0], [1], [0, 0, 1, 1], [], []>} : vector<8x32xbf16>, vector<32x128xbf16>, vector<8x128xf32> -> vector<8x128xf32>
    %c0_3 = arith.constant 0 : index
    %c0_4 = arith.constant 0 : index
    %5 = vector.load %arg3[%c0_3, %c0_4] : memref<1x128xf32, #tpu.memory_space<vmem>>, vector<1x128xf32>
    %6 = vector.broadcast %5 : vector<1x128xf32> to vector<8x128xf32>
    %7 = arith.mulf %4, %6 : vector<8x128xf32>
    %c0_5 = arith.constant 0 : index
    %c0_6 = arith.constant 0 : index
    %8 = vector.load %arg4[%c0_5, %c0_6] : memref<1x128xf32, #tpu.memory_space<vmem>>, vector<1x128xf32>
    %9 = vector.broadcast %8 : vector<1x128xf32> to vector<8x128xf32>
    %10 = arith.addf %7, %9 : vector<8x128xf32>
    %11 = arith.negf %10 : vector<8x128xf32>
    %12 = math.exp %11 : vector<8x128xf32>
    %cst_7 = arith.constant 1.000000e+00 : f32
    %13 = vector.broadcast %cst_7 : f32 to vector<8x128xf32>
    %14 = arith.addf %13, %12 : vector<8x128xf32>
    %15 = arith.divf %13, %14 : vector<8x128xf32>
    %16 = arith.mulf %10, %15 : vector<8x128xf32>
    %c0_8 = arith.constant 0 : index
    %c0_9 = arith.constant 0 : index
    %17 = vector.load %arg5[%c0_8, %c0_9] : memref<128x128xi8, #tpu.memory_space<vmem>>, vector<128x128xi8>
    %18 = arith.sitofp %17 : vector<128x128xi8> to vector<128x128xbf16>
    %19 = arith.truncf %16 : vector<8x128xf32> to vector<8x128xbf16>
    %cst_10 = arith.constant dense<0.000000e+00> : vector<8x128xf32>
    %20 = tpu.matmul %19, %18, %cst_10 {dimension_numbers = #tpu.dot_dimension_numbers<[1], [0], [0], [1], [0, 0, 1, 1], [], []>} : vector<8x128xbf16>, vector<128x128xbf16>, vector<8x128xf32> -> vector<8x128xf32>
    %c0_11 = arith.constant 0 : index
    %c0_12 = arith.constant 0 : index
    %21 = vector.load %arg6[%c0_11, %c0_12] : memref<1x128xf32, #tpu.memory_space<vmem>>, vector<1x128xf32>
    %22 = vector.broadcast %21 : vector<1x128xf32> to vector<8x128xf32>
    %23 = arith.mulf %20, %22 : vector<8x128xf32>
    %c0_13 = arith.constant 0 : index
    %c0_14 = arith.constant 0 : index
    %24 = vector.load %arg7[%c0_13, %c0_14] : memref<1x128xf32, #tpu.memory_space<vmem>>, vector<1x128xf32>
    %25 = vector.broadcast %24 : vector<1x128xf32> to vector<8x128xf32>
    %26 = arith.addf %23, %25 : vector<8x128xf32>
    %c0_15 = arith.constant 0 : index
    %c0_16 = arith.constant 0 : index
    %27 = vector.load %arg8[%c0_15, %c0_16] : memref<8x128xf32, #tpu.memory_space<vmem>>, vector<8x128xf32>
    tpu.vector_store %arg8[%c0_15, %c0_16], %26 {strides = array<i32>} : memref<8x128xf32, #tpu.memory_space<vmem>>, vector<8x128xf32>,
    return
  }
  func.func @transform_0(%arg0: i32) -> (i32, i32) {
    %c0_i32 = arith.constant 0 : i32
    %c0_i32_0 = arith.constant 0 : i32
    %c0_i32_1 = arith.constant 0 : i32
    return %c0_i32, %c0_i32_0 : i32, i32
  }
  func.func @transform_1(%arg0: i32) -> (i32, i32) {
    %c0_i32 = arith.constant 0 : i32
    %c0_i32_0 = arith.constant 0 : i32
    %c0_i32_1 = arith.constant 0 : i32
    return %c0_i32, %c0_i32_0 : i32, i32
  }
  func.func @transform_2(%arg0: i32) -> (i32, i32) {
    %c0_i32 = arith.constant 0 : i32
    %c0_i32_0 = arith.constant 0 : i32
    %c0_i32_1 = arith.constant 0 : i32
    return %c0_i32, %c0_i32_0 : i32, i32
  }
  func.func @transform_3(%arg0: i32) -> (i32, i32) {
    %c0_i32 = arith.constant 0 : i32
    %c0_i32_0 = arith.constant 0 : i32
    %c0_i32_1 = arith.constant 0 : i32
    return %c0_i32, %c0_i32_0 : i32, i32
  }
  func.func @transform_4(%arg0: i32) -> (i32, i32) {
    %c0_i32 = arith.constant 0 : i32
    %c0_i32_0 = arith.constant 0 : i32
    return %c0_i32, %arg0 : i32, i32
  }
  func.func @transform_5(%arg0: i32) -> (i32, i32) {
    %c0_i32 = arith.constant 0 : i32
    %c0_i32_0 = arith.constant 0 : i32
    return %c0_i32, %arg0 : i32, i32
  }
  func.func @transform_6(%arg0: i32) -> (i32, i32) {
    %c0_i32 = arith.constant 0 : i32
    %c0_i32_0 = arith.constant 0 : i32
    return %c0_i32, %arg0 : i32, i32
  }
  func.func @transform_7(%arg0: i32) -> (i32, i32) {
    %c0_i32 = arith.constant 0 : i32
    %c0_i32_0 = arith.constant 0 : i32
    return %c0_i32, %arg0 : i32, i32
  }
}

</mosaic_0001>

<llo_original>
// kernel: tpu_custom_call.1
$region0: #{tpu_custom_call.1}
  #allocation0 [shape = 'u32[]', space=smem, size = 0x4, offset = 0x4, fixed_abs, tag = 'smem constant byte address 0x4 - core index']
  #allocation1 [shape = 'u32[144,128]{1,0:T(1,128)}', space=vmem, size = 0x12000, scoped, tag = 'internal scratch']
  %s0 = inlined_call_operand.hbm [shape: f32[8,32], index: 0, kind: input, shape index: {}]
  %s1 = inlined_call_operand.hbm [shape: s8[32,128], index: 1, kind: input, shape index: {}]
  %s2 = inlined_call_operand.vmem [shape: f32[1,128], index: 2, kind: input, shape index: {}]
  %s3 = inlined_call_operand.vmem [shape: f32[1,128], index: 3, kind: input, shape index: {}]
  %s4 = inlined_call_operand.hbm [shape: s8[128,128], index: 4, kind: input, shape index: {}]
  %s5 = inlined_call_operand.vmem [shape: f32[1,128], index: 5, kind: input, shape index: {}]
  %s6 = inlined_call_operand.vmem [shape: f32[1,128], index: 6, kind: input, shape index: {}]
  %s7 = inlined_call_operand.hbm [shape: f32[8,128], index: 7, kind: output, shape index: {}]
  %s8 = sld [smem:[#allocation0]]
  $region50: #{tpu_custom_call.1} parent=0
    _
  %s10 = ssub.s32 1, %s8
  %s11 = scalar_select 0, %s10, %s8
  $region1: #{tpu_custom_call.1} parent=0
    #allocation2 [shape = 'u8[4096]{0}', space=vmem, size = 0x1000, scoped, tag = 'input window, operand 0, single buffered']
    #allocation3 [shape = 's32[1]{0}', space=sflag, size = 0x4, scoped, tag = 'scoped memory for tpu_custom_call.1']
    #allocation4 [shape = 's32[1]{0}', space=sflag, size = 0x4, scoped, tag = 'scoped memory for tpu_custom_call.1']
    #allocation5 [shape = 'u8[4096]{0}', space=vmem, size = 0x1000, scoped, tag = 'input window, operand 1, single buffered']
    #allocation6 [shape = 's32[1]{0}', space=sflag, size = 0x4, scoped, tag = 'scoped memory for tpu_custom_call.1']
    #allocation7 [shape = 'u8[16384]{0}', space=vmem, size = 0x4000, scoped, tag = 'input window, operand 4, single buffered']
    #allocation8 [shape = 'u8[4096]{0}', space=vmem, size = 0x1000, scoped, tag = 'output window, operand 0, single buffered']
    %12 = vsyncpa [#allocation3], 0
    %13 = vsyncpa [#allocation6], 0
    %14 = vsyncpa [#allocation4], 0
    // Predicated region
    $region2: #{tpu_custom_call.1} parent=1 // pred_check
      _
    $region3: #{tpu_custom_call.1} parent=1 // pred_check_branch
      %16 = sbr.rel (0) target = $region5
    $region4: #{tpu_custom_call.1} parent=1 // pred_region
      %s18 = ssub.s32 128, 128
      %19 = vsyncadd [#allocation3], %s18
      %s21 = sshll.u32 [#allocation2], 4
      %s22 = int_to_ptr.vmem [resolvable:$true] %s21
      %24 = dma.hbm_to_vmem [thread:$0]  %s0, 128, %s22, [#allocation3]
    $region5: #{tpu_custom_call.1} parent=1 // pred_fallthru
      _
    // Predicated region
    $region6: #{tpu_custom_call.1} parent=1 // pred_check
      _
    $region7: #{tpu_custom_call.1} parent=1 // pred_check_branch
      %26 = sbr.rel (0) target = $region9
    $region8: #{tpu_custom_call.1} parent=1 // pred_region
      %s28 = ssub.s32 128, 128
      %29 = vsyncadd [#allocation6], %s28
      %s31 = sshll.u32 [#allocation5], 4
      %s32 = int_to_ptr.vmem [resolvable:$true] %s31
      %34 = dma.hbm_to_vmem [thread:$0]  %s1, 128, %s32, [#allocation6]
    $region9: #{tpu_custom_call.1} parent=1 // pred_fallthru
      _
    // Predicated region
    $region10: #{tpu_custom_call.1} parent=1 // pred_check
      _
    $region11: #{tpu_custom_call.1} parent=1 // pred_check_branch
      %36 = sbr.rel (0) target = $region13
    $region12: #{tpu_custom_call.1} parent=1 // pred_region
      _
    $region13: #{tpu_custom_call.1} parent=1 // pred_fallthru
      _
    // Predicated region
    $region14: #{tpu_custom_call.1} parent=1 // pred_check
      _
    $region15: #{tpu_custom_call.1} parent=1 // pred_check_branch
      %38 = sbr.rel (0) target = $region17
    $region16: #{tpu_custom_call.1} parent=1 // pred_region
      _
    $region17: #{tpu_custom_call.1} parent=1 // pred_fallthru
      _
    // Predicated region
    $region18: #{tpu_custom_call.1} parent=1 // pred_check
      _
    $region19: #{tpu_custom_call.1} parent=1 // pred_check_branch
      %40 = sbr.rel (0) target = $region21
    $region20: #{tpu_custom_call.1} parent=1 // pred_region
      %s42 = ssub.s32 512, 512
      %43 = vsyncadd [#allocation6], %s42
      %s44 = sshll.u32 [#allocation7], 4
      %s45 = int_to_ptr.vmem [resolvable:$true] %s44
      %50 = dma.hbm_to_vmem [thread:$0]  %s4, 512, %s45, [#allocation6], 128, 128, 8
    $region21: #{tpu_custom_call.1} parent=1 // pred_fallthru
      _
    // Predicated region
    $region22: #{tpu_custom_call.1} parent=1 // pred_check
      _
    $region23: #{tpu_custom_call.1} parent=1 // pred_check_branch
      %52 = sbr.rel (0) target = $region25
    $region24: #{tpu_custom_call.1} parent=1 // pred_region
      _
    $region25: #{tpu_custom_call.1} parent=1 // pred_fallthru
      _
    // Predicated region
    $region26: #{tpu_custom_call.1} parent=1 // pred_check
      _
    $region27: #{tpu_custom_call.1} parent=1 // pred_check_branch
      %54 = sbr.rel (0) target = $region29
    $region28: #{tpu_custom_call.1} parent=1 // pred_region
      _
    $region29: #{tpu_custom_call.1} parent=1 // pred_fallthru
      _
    // Predicated region
    $region30: #{tpu_custom_call.1} parent=1 // pred_check
      _
    $region31: #{tpu_custom_call.1} parent=1 // pred_check_branch
      %56 = sbr.rel (0) target = $region33
    $region32: #{tpu_custom_call.1} parent=1 // pred_region
      %57 = dma.done [#allocation3], 128
    $region33: #{tpu_custom_call.1} parent=1 // pred_fallthru
      _
    // Predicated region
    $region34: #{tpu_custom_call.1} parent=1 // pred_check
      _
    $region35: #{tpu_custom_call.1} parent=1 // pred_check_branch
      %59 = sbr.rel (0) target = $region37
    $region36: #{tpu_custom_call.1} parent=1 // pred_region
      %60 = dma.done [#allocation6], 128
    $region37: #{tpu_custom_call.1} parent=1 // pred_fallthru
      _
    // Predicated region
    $region38: #{tpu_custom_call.1} parent=1 // pred_check
      _
    $region39: #{tpu_custom_call.1} parent=1 // pred_check_branch
      %62 = sbr.rel (0) target = $region41
    $region40: #{tpu_custom_call.1} parent=1 // pred_region
      %63 = dma.done [#allocation6], 512
    $region41: #{tpu_custom_call.1} parent=1 // pred_fallthru
      _
    %v65 = vld [vmem:[#allocation2] sm:$0xff]
    %v66 = vpack.c.bf16 %v65, %v65
    %v67 = vld [vmem:[#allocation5] sm:$0xff]
    %v68 = vunpack.c.l.s8.bf16 %v67
    %v69 = vunpack.c.h.s8.bf16 %v67
    %vm70 = vcmask 261120
    %v72 = vsel %vm70, %v66, 0
    %74 = vmatprep.subr.bf16.mxu0 0
    %75 = vmatpush1.bf16.msra.mxu0 0
    %76 = vmatprep.subr.bf16.mxu0 0
    %77 = vmatpush1.bf16.msra.mxu0 0
    %78 = vmatprep.subr.bf16.mxu0 0
    %79 = vmatpush1.bf16.msra.mxu0 0
    %80 = vmatprep.subr.bf16.mxu0 0
    %81 = vmatpush1.bf16.msra.mxu0 0
    %82 = vmatprep.subr.bf16.mxu0 0
    %83 = vmatpush1.bf16.msra.mxu0 0
    %84 = vmatprep.subr.bf16.mxu0 0
    %85 = vmatpush1.bf16.msra.mxu0 0
    %86 = vmatprep.subr.bf16.mxu0 0
    %87 = vmatpush1.bf16.msra.mxu0 %v69
    %88 = vmatprep.subr.bf16.mxu0 0
    %89 = vmatpush1.bf16.msra.mxu0 %v68
    %90 = vmatprep.subr.bf16.mxu0 0
    %91 = vmatpush2.bf16.msra.mxu0 0
    %92 = vmatprep.subr.bf16.mxu0 0
    %93 = vmatpush2.bf16.msra.mxu0 0
    %94 = vmatprep.subr.bf16.mxu0 0
    %95 = vmatpush2.bf16.msra.mxu0 0
    %96 = vmatprep.subr.bf16.mxu0 0
    %97 = vmatpush2.bf16.msra.mxu0 0
    %98 = vmatprep.subr.bf16.mxu0 0
    %99 = vmatpush2.bf16.msra.mxu0 0
    %100 = vmatprep.subr.bf16.mxu0 0
    %101 = vmatpush2.bf16.msra.mxu0 0
    %102 = vmatprep.subr.bf16.mxu0 0
    %103 = vmatpush2.bf16.msra.mxu0 0
    %104 = vmatprep.subr.bf16.mxu0 0
    %105 = vmatpush2.bf16.msra.mxu0 0
    %106 = vmatprep.mubr.bf16.mxu0 0
    %107 = vmatmul.mubr.bf16.gmra.mxu0 %v72
    %v108 = vpop.f32.mrf.mxu0
    %v109 = vadd.f32 0.0, %v108
    %v110 = vpop.f32.mrf.mxu0
    %v111 = vpop.f32.mrf.mxu0
    %v112 = vpop.f32.mrf.mxu0
    %113 = vdwg.mxu0
    %v114 = vld [vmem:[%s2] sm:$0x1]
    %v116 = vlaneseq
    %v117 = vshrl.u32 %v116, 7
    %v118 = vsub.s32 0, %v117
    %v119 = vrot.slane %v114, %v118
    %v121 = vmul.f32 %v109, %v119
    %v122 = vld [vmem:[%s3] sm:$0x1]
    %v124 = vlaneseq
    %v125 = vshrl.u32 %v124, 7
    %v126 = vsub.s32 0, %v125
    %v127 = vrot.slane %v122, %v126
    %v129 = vadd.f32 %v121, %v127
    %v130 = vxor.u32 %v129, 2147483648
    %v131 = vmul.f32 %v130, 1.442695
    %v132 = vpow.pop %v131
    %v133 = vadd.f32 %v132, 1.0
    %v134 = vrcp.pop %v133
    %v135 = vmul.f32 1.0, %v134
    %v136 = vmul.f32 %v129, %v135
    %v137 = vld [vmem:[#allocation7] sm:$0xff]
    %v138 = vld [vmem:[#allocation7 + $0x8] sm:$0xff]
    %v139 = vld [vmem:[#allocation7 + $0x10] sm:$0xff]
    %v140 = vld [vmem:[#allocation7 + $0x18] sm:$0xff]
    %v141 = vunpack.c.l.s8.bf16 %v137
    %v142 = vunpack.c.h.s8.bf16 %v137
    %v143 = vunpack.c.l.s8.bf16 %v138
    %v144 = vunpack.c.h.s8.bf16 %v138
    %v145 = vunpack.c.l.s8.bf16 %v139
    %v146 = vunpack.c.h.s8.bf16 %v139
    %v147 = vunpack.c.l.s8.bf16 %v140
    %v148 = vunpack.c.h.s8.bf16 %v140
    %v149 = vpack.c.bf16 %v136, %v136
    %150 = vmatprep.subr.bf16.mxu0 0
    %151 = vmatpush1.bf16.msra.mxu0 %v148
    %152 = vmatprep.subr.bf16.mxu0 0
    %153 = vmatpush1.bf16.msra.mxu0 %v147
    %154 = vmatprep.subr.bf16.mxu0 0
    %155 = vmatpush1.bf16.msra.mxu0 %v146
    %156 = vmatprep.subr.bf16.mxu0 0
    %157 = vmatpush1.bf16.msra.mxu0 %v145
    %158 = vmatprep.subr.bf16.mxu0 0
    %159 = vmatpush1.bf16.msra.mxu0 %v144
    %160 = vmatprep.subr.bf16.mxu0 0
    %161 = vmatpush1.bf16.msra.mxu0 %v143
    %162 = vmatprep.subr.bf16.mxu0 0
    %163 = vmatpush1.bf16.msra.mxu0 %v142
    %164 = vmatprep.subr.bf16.mxu0 0
    %165 = vmatpush1.bf16.msra.mxu0 %v141
    %166 = vmatprep.subr.bf16.mxu0 0
    %167 = vmatpush2.bf16.msra.mxu0 0
    %168 = vmatprep.subr.bf16.mxu0 0
    %169 = vmatpush2.bf16.msra.mxu0 0
    %170 = vmatprep.subr.bf16.mxu0 0
    %171 = vmatpush2.bf16.msra.mxu0 0
    %172 = vmatprep.subr.bf16.mxu0 0
    %173 = vmatpush2.bf16.msra.mxu0 0
    %174 = vmatprep.subr.bf16.mxu0 0
    %175 = vmatpush2.bf16.msra.mxu0 0
    %176 = vmatprep.subr.bf16.mxu0 0
    %177 = vmatpush2.bf16.msra.mxu0 0
    %178 = vmatprep.subr.bf16.mxu0 0
    %179 = vmatpush2.bf16.msra.mxu0 0
    %180 = vmatprep.subr.bf16.mxu0 0
    %181 = vmatpush2.bf16.msra.mxu0 0
    %182 = vmatprep.mubr.bf16.mxu0 0
    %183 = vmatmul.mubr.bf16.gmra.mxu0 %v149
    %v184 = vpop.f32.mrf.mxu0
    %v185 = vadd.f32 0.0, %v184
    %v186 = vpop.f32.mrf.mxu0
    %v187 = vpop.f32.mrf.mxu0
    %v188 = vpop.f32.mrf.mxu0
    %189 = vdwg.mxu0
    %v190 = vld [vmem:[%s5] sm:$0x1]
    %v192 = vlaneseq
    %v193 = vshrl.u32 %v192, 7
    %v194 = vsub.s32 0, %v193
    %v195 = vrot.slane %v190, %v194
    %v197 = vmul.f32 %v185, %v195
    %v198 = vld [vmem:[%s6] sm:$0x1]
    %v200 = vlaneseq
    %v201 = vshrl.u32 %v200, 7
    %v202 = vsub.s32 0, %v201
    %v203 = vrot.slane %v198, %v202
    %v205 = vadd.f32 %v197, %v203
    %206 = vst [vmem:[#allocation8] sm:$0xff] %v205
    // Predicated region
    $region42: #{tpu_custom_call.1} parent=1 // pred_check
      _
    $region43: #{tpu_custom_call.1} parent=1 // pred_check_branch
      %208 = sbr.rel (0) target = $region45
    $region44: #{tpu_custom_call.1} parent=1 // pred_region
      %s210 = ssub.s32 128, 128
      %211 = vsyncadd [#allocation4], %s210
      %s213 = sshll.u32 [#allocation8], 4
      %s214 = int_to_ptr.vmem [resolvable:$true] %s213
      %216 = dma.vmem_to_hbm [thread:$0]  %s214, 128, %s7, [#allocation4]
    $region45: #{tpu_custom_call.1} parent=1 // pred_fallthru
      _
    // Predicated region
    $region46: #{tpu_custom_call.1} parent=1 // pred_check
      _
    $region47: #{tpu_custom_call.1} parent=1 // pred_check_branch
      %218 = sbr.rel (0) target = $region49
    $region48: #{tpu_custom_call.1} parent=1 // pred_region
      %219 = dma.done [#allocation4], 128
    $region49: #{tpu_custom_call.1} parent=1 // pred_fallthru
      _
    %220 = vsyncpa [#allocation3], 1
    %221 = vsyncpa [#allocation6], 1
    %222 = vsyncpa [#allocation4], 1

</llo_original>
